<compile_context>
chip_gen: v7x
topology: tpu7x:2x2x1
jax: 0.10.0
libtpu: 0.0.40
codegen_flags: <defaults>
</compile_context>

<pallas_src>
import math

import jax
import jax.numpy as jnp
from jax.experimental import pallas as pl
from jax.experimental.pallas import tpu as pltpu


def _vdenoiser_kernel(coef_ref, x_ref, w1t_ref, b1f_ref, w2t_ref, b2_ref, o_ref):
    # coef_ref : SMEM (3*N,) flat  -> [c_in_0, c_skip_0, c_out_0, c_in_1, ...]
    # x_ref    : VMEM (N, C, HW)   lane-dense input
    # w1t_ref  : VMEM (HID, C)     W1^T
    # b1f_ref  : VMEM (N, HID, 1)  b1 + bt + t_n * wt (folded on host)
    # w2t_ref  : VMEM (C, HID)     W2^T
    # b2_ref   : VMEM (C, 1)
    n_batch, n_chan, _ = x_ref.shape

    # Hoist the (tiny) shared weight loads out of the batch loop.
    w1t = w1t_ref[...]          # (HID, C)
    w2t = w2t_ref[...]          # (C, HID)
    b2 = b2_ref[...]            # (C, 1)

    for n in range(n_batch):    # static unroll; N is tiny (single grid step)
        c_in = coef_ref[3 * n + 0]      # SMEM scalar reads, broadcast for free
        c_skip = coef_ref[3 * n + 1]
        c_out = coef_ref[3 * n + 2]

        x = x_ref[n]                    # (C, HW), lane-dense
        xin = x * c_in

        # Layer 1: K = C is tiny -> rank-1 VPU broadcast-FMAs, skip the MXU.
        h = w1t[:, 0:1] * xin[0:1, :]                       # (HID, HW)
        for c in range(1, n_chan):
            h = h + w1t[:, c:c + 1] * xin[c:c + 1, :]
        h = h + b1f_ref[n]                                  # (HID, 1) broadcast
        h = h * jax.nn.sigmoid(h)                           # SiLU (EUP)

        # Layer 2: HID-contraction on the MXU, lane-dense (C, HW) result.
        y = jnp.dot(w2t, h, preferred_element_type=jnp.float32) + b2

        # model_output * c_out + input * c_skip
        o_ref[n] = (y * c_out + x * c_skip).astype(o_ref.dtype)


def vdenoiser_forward(x_nchw, sigma, params):
    """x_nchw: (N, C, H, W) float32; sigma: (N,) float32."""
    N, C, H, W = x_nchw.shape
    HW = H * W
    HID = params["w1"].shape[1]

    # Free reshape: NCHW -> (N, C, H*W). No transpose, no extra HBM round trip.
    x = x_nchw.reshape(N, C, HW)

    # VDenoiser.get_scalings (sigma_data = 1) and sigma_to_t: tiny (N,) math,
    # precomputed on host; c_in/c_skip/c_out packed flat for SMEM.
    s = sigma.astype(jnp.float32)
    c_in = jax.lax.rsqrt(s * s + 1.0)
    c_skip = 1.0 / (s * s + 1.0)
    c_out = -s * c_in
    t = jnp.arctan(s) * (2.0 / math.pi)
    coefs = jnp.stack([c_in, c_skip, c_out], axis=-1).reshape(-1)   # (3*N,)

    # One-time weight prep for the (channels-on-sublanes, HW-on-lanes) layout.
    w1t = params["w1"].T                                            # (HID, C)
    # Fold b1 + bt + t_n*wt into one per-batch bias column (N*HID floats).
    b1f = ((params["b1"] + params["bt"])[None, :]
           + t[:, None] * params["wt"][None, :]).reshape(N, HID, 1)
    w2t = params["w2"].T                                            # (C, HID)
    b2 = params["b2"].reshape(C, 1)

    vmem = pl.BlockSpec(memory_space=pltpu.MemorySpace.VMEM)
    smem = pl.BlockSpec(memory_space=pltpu.MemorySpace.SMEM)
    out = pl.pallas_call(
        _vdenoiser_kernel,
        out_shape=jax.ShapeDtypeStruct((N, C, HW), jnp.float32),
        in_specs=[smem, vmem, vmem, vmem, vmem, vmem],
        out_specs=vmem,
    )(coefs, x, w1t, b1f, w2t, b2)

    # Free reshape back: (N, C, H*W) -> NCHW.
    return out.reshape(N, C, H, W)


def _reference(x_nchw, sigma, params):
    """Pure-JAX reference mirroring VDenoiser.forward with the same inner model."""
    N, C, H, W = x_nchw.shape
    s = sigma.reshape(N, 1, 1, 1)
    c_skip = 1.0 / (s * s + 1.0)
    c_out = -s / jnp.sqrt(s * s + 1.0)
    c_in = 1.0 / jnp.sqrt(s * s + 1.0)
    t = jnp.arctan(sigma) / math.pi * 2.0                   # (N,)

    xin = jnp.transpose(x_nchw * c_in, (0, 2, 3, 1)).reshape(N, H * W, C)
    h = jnp.einsum("nkc,ch->nkh", xin, params["w1"],
                   precision=jax.lax.Precision.HIGHEST)
    h = h + params["b1"] + t[:, None, None] * params["wt"] + params["bt"]
    h = h * jax.nn.sigmoid(h)
    y = jnp.einsum("nkh,hc->nkc", h, params["w2"],
                   precision=jax.lax.Precision.HIGHEST) + params["b2"]
    y = jnp.transpose(y.reshape(N, H, W, C), (0, 3, 1, 2))
    return y * c_out + x_nchw * c_skip


if __name__ == "__main__":
    key = jax.random.PRNGKey(0)
    kx, ks, k1, k2, k3 = jax.random.split(key, 5)

    N, C, H, W, HID = 2, 4, 16, 16, 32
    x = jax.random.normal(kx, (N, C, H, W), dtype=jnp.float32)
    sigma = jax.random.uniform(ks, (N,), dtype=jnp.float32,
                               minval=0.1, maxval=3.0)

    params = {
        "w1": jax.random.normal(k1, (C, HID), dtype=jnp.float32) * 0.2,
        "b1": jnp.zeros((HID,), dtype=jnp.float32),
        "wt": jax.random.normal(k2, (HID,), dtype=jnp.float32) * 0.2,
        "bt": jnp.zeros((HID,), dtype=jnp.float32),
        "w2": jax.random.normal(k3, (HID, C), dtype=jnp.float32) * 0.2,
        "b2": jnp.zeros((C,), dtype=jnp.float32),
    }

    out = vdenoiser_forward(x, sigma, params)
    jax.block_until_ready(out)

    ref = _reference(x, sigma, params)
    assert out.shape == (N, C, H, W)
    assert jnp.allclose(out, ref, atol=1e-4, rtol=1e-4), "mismatch vs reference"

    print("KERNEL_OK")
</pallas_src>

<mosaic_0001>
module attributes {stable_mosaic.version = 11 : i64} {
  func.func @_vdenoiser_kernel(%arg0: memref<6xf32, #tpu.memory_space<smem>>, %arg1: memref<2x4x256xf32, #tpu.memory_space<vmem>>, %arg2: memref<32x4xf32, #tpu.memory_space<vmem>>, %arg3: memref<2x32x1xf32, #tpu.memory_space<vmem>>, %arg4: memref<4x32xf32, #tpu.memory_space<vmem>>, %arg5: memref<4x1xf32, #tpu.memory_space<vmem>>, %arg6: memref<2x4x256xf32, #tpu.memory_space<vmem>>) attributes {dimension_semantics = [], scalar_prefetch = 0 : i64, scratch_operands = 0 : i64, tpu.core_type = #tpu.core_type<tc>} {
    %c0 = arith.constant 0 : index
    %c0_0 = arith.constant 0 : index
    %0 = vector.load %arg2[%c0, %c0_0] : memref<32x4xf32, #tpu.memory_space<vmem>>, vector<32x4xf32>
    %c0_1 = arith.constant 0 : index
    %c0_2 = arith.constant 0 : index
    %1 = vector.load %arg4[%c0_1, %c0_2] : memref<4x32xf32, #tpu.memory_space<vmem>>, vector<4x32xf32>
    %c0_3 = arith.constant 0 : index
    %c0_4 = arith.constant 0 : index
    %2 = vector.load %arg5[%c0_3, %c0_4] : memref<4x1xf32, #tpu.memory_space<vmem>>, vector<4x1xf32>
    %c0_5 = arith.constant 0 : index
    %3 = memref.load %arg0[%c0_5] : memref<6xf32, #tpu.memory_space<smem>>
    %c1 = arith.constant 1 : index
    %4 = memref.load %arg0[%c1] : memref<6xf32, #tpu.memory_space<smem>>
    %c2 = arith.constant 2 : index
    %5 = memref.load %arg0[%c2] : memref<6xf32, #tpu.memory_space<smem>>
    %c0_6 = arith.constant 0 : index
    %c0_7 = arith.constant 0 : index
    %c0_8 = arith.constant 0 : index
    %6 = vector.load %arg1[%c0_6, %c0_7, %c0_8] : memref<2x4x256xf32, #tpu.memory_space<vmem>>, vector<1x4x256xf32>
    %7 = vector.shape_cast %6 : vector<1x4x256xf32> to vector<4x256xf32>
    %8 = vector.broadcast %3 : f32 to vector<4x256xf32>
    %9 = arith.mulf %7, %8 : vector<4x256xf32>
    %10 = vector.extract_strided_slice %0 {offsets = [0, 0], sizes = [32, 1], strides = [1, 1]} : vector<32x4xf32> to vector<32x1xf32>
    %11 = vector.extract_strided_slice %9 {offsets = [0, 0], sizes = [1, 256], strides = [1, 1]} : vector<4x256xf32> to vector<1x256xf32>
    %12 = vector.broadcast %10 : vector<32x1xf32> to vector<32x256xf32>
    %13 = vector.broadcast %11 : vector<1x256xf32> to vector<32x256xf32>
    %14 = arith.mulf %12, %13 : vector<32x256xf32>
    %15 = vector.extract_strided_slice %0 {offsets = [0, 1], sizes = [32, 1], strides = [1, 1]} : vector<32x4xf32> to vector<32x1xf32>
    %16 = vector.extract_strided_slice %9 {offsets = [1, 0], sizes = [1, 256], strides = [1, 1]} : vector<4x256xf32> to vector<1x256xf32>
    %17 = vector.broadcast %15 : vector<32x1xf32> to vector<32x256xf32>
    %18 = vector.broadcast %16 : vector<1x256xf32> to vector<32x256xf32>
    %19 = arith.mulf %17, %18 : vector<32x256xf32>
    %20 = arith.addf %14, %19 : vector<32x256xf32>
    %21 = vector.extract_strided_slice %0 {offsets = [0, 2], sizes = [32, 1], strides = [1, 1]} : vector<32x4xf32> to vector<32x1xf32>
    %22 = vector.extract_strided_slice %9 {offsets = [2, 0], sizes = [1, 256], strides = [1, 1]} : vector<4x256xf32> to vector<1x256xf32>
    %23 = vector.broadcast %21 : vector<32x1xf32> to vector<32x256xf32>
    %24 = vector.broadcast %22 : vector<1x256xf32> to vector<32x256xf32>
    %25 = arith.mulf %23, %24 : vector<32x256xf32>
    %26 = arith.addf %20, %25 : vector<32x256xf32>
    %27 = vector.extract_strided_slice %0 {offsets = [0, 3], sizes = [32, 1], strides = [1, 1]} : vector<32x4xf32> to vector<32x1xf32>
    %28 = vector.extract_strided_slice %9 {offsets = [3, 0], sizes = [1, 256], strides = [1, 1]} : vector<4x256xf32> to vector<1x256xf32>
    %29 = vector.broadcast %27 : vector<32x1xf32> to vector<32x256xf32>
    %30 = vector.broadcast %28 : vector<1x256xf32> to vector<32x256xf32>
    %31 = arith.mulf %29, %30 : vector<32x256xf32>
    %32 = arith.addf %26, %31 : vector<32x256xf32>
    %c0_9 = arith.constant 0 : index
    %c0_10 = arith.constant 0 : index
    %c0_11 = arith.constant 0 : index
    %33 = vector.load %arg3[%c0_9, %c0_10, %c0_11] : memref<2x32x1xf32, #tpu.memory_space<vmem>>, vector<1x32x1xf32>
    %34 = vector.shape_cast %33 : vector<1x32x1xf32> to vector<32x1xf32>
    %35 = vector.broadcast %34 : vector<32x1xf32> to vector<32x256xf32>
    %36 = arith.addf %32, %35 : vector<32x256xf32>
    %37 = arith.negf %36 : vector<32x256xf32>
    %38 = math.exp %37 : vector<32x256xf32>
    %cst = arith.constant 1.000000e+00 : f32
    %39 = vector.broadcast %cst : f32 to vector<32x256xf32>
    %40 = arith.addf %39, %38 : vector<32x256xf32>
    %41 = arith.divf %39, %40 : vector<32x256xf32>
    %42 = arith.mulf %36, %41 : vector<32x256xf32>
    %cst_12 = arith.constant dense<0.000000e+00> : vector<4x256xf32>
    %43 = tpu.matmul %1, %42, %cst_12 {dimension_numbers = #tpu.dot_dimension_numbers<[1], [0], [0], [1], [0, 0, 1, 1], [], []>} : vector<4x32xf32>, vector<32x256xf32>, vector<4x256xf32> -> vector<4x256xf32>
    %44 = vector.broadcast %2 : vector<4x1xf32> to vector<4x256xf32>
    %45 = arith.addf %43, %44 : vector<4x256xf32>
    %46 = vector.broadcast %5 : f32 to vector<4x256xf32>
    %47 = arith.mulf %45, %46 : vector<4x256xf32>
    %48 = vector.broadcast %4 : f32 to vector<4x256xf32>
    %49 = arith.mulf %7, %48 : vector<4x256xf32>
    %50 = arith.addf %47, %49 : vector<4x256xf32>
    %c0_13 = arith.constant 0 : index
    %c0_14 = arith.constant 0 : index
    %c0_15 = arith.constant 0 : index
    %51 = vector.load %arg6[%c0_13, %c0_14, %c0_15] : memref<2x4x256xf32, #tpu.memory_space<vmem>>, vector<1x4x256xf32>
    %52 = vector.shape_cast %51 : vector<1x4x256xf32> to vector<4x256xf32>
    %53 = vector.shape_cast %50 : vector<4x256xf32> to vector<1x4x256xf32>
    tpu.vector_store %arg6[%c0_13, %c0_14, %c0_15], %53 {strides = array<i32>} : memref<2x4x256xf32, #tpu.memory_space<vmem>>, vector<1x4x256xf32>,
    %c3 = arith.constant 3 : index
    %54 = memref.load %arg0[%c3] : memref<6xf32, #tpu.memory_space<smem>>
    %c4 = arith.constant 4 : index
    %55 = memref.load %arg0[%c4] : memref<6xf32, #tpu.memory_space<smem>>
    %c5 = arith.constant 5 : index
    %56 = memref.load %arg0[%c5] : memref<6xf32, #tpu.memory_space<smem>>
    %c1_16 = arith.constant 1 : index
    %c0_17 = arith.constant 0 : index
    %c0_18 = arith.constant 0 : index
    %57 = vector.load %arg1[%c1_16, %c0_17, %c0_18] : memref<2x4x256xf32, #tpu.memory_space<vmem>>, vector<1x4x256xf32>
    %58 = vector.shape_cast %57 : vector<1x4x256xf32> to vector<4x256xf32>
    %59 = vector.broadcast %54 : f32 to vector<4x256xf32>
    %60 = arith.mulf %58, %59 : vector<4x256xf32>
    %61 = vector.extract_strided_slice %0 {offsets = [0, 0], sizes = [32, 1], strides = [1, 1]} : vector<32x4xf32> to vector<32x1xf32>
    %62 = vector.extract_strided_slice %60 {offsets = [0, 0], sizes = [1, 256], strides = [1, 1]} : vector<4x256xf32> to vector<1x256xf32>
    %63 = vector.broadcast %61 : vector<32x1xf32> to vector<32x256xf32>
    %64 = vector.broadcast %62 : vector<1x256xf32> to vector<32x256xf32>
    %65 = arith.mulf %63, %64 : vector<32x256xf32>
    %66 = vector.extract_strided_slice %0 {offsets = [0, 1], sizes = [32, 1], strides = [1, 1]} : vector<32x4xf32> to vector<32x1xf32>
    %67 = vector.extract_strided_slice %60 {offsets = [1, 0], sizes = [1, 256], strides = [1, 1]} : vector<4x256xf32> to vector<1x256xf32>
    %68 = vector.broadcast %66 : vector<32x1xf32> to vector<32x256xf32>
    %69 = vector.broadcast %67 : vector<1x256xf32> to vector<32x256xf32>
    %70 = arith.mulf %68, %69 : vector<32x256xf32>
    %71 = arith.addf %65, %70 : vector<32x256xf32>
    %72 = vector.extract_strided_slice %0 {offsets = [0, 2], sizes = [32, 1], strides = [1, 1]} : vector<32x4xf32> to vector<32x1xf32>
    %73 = vector.extract_strided_slice %60 {offsets = [2, 0], sizes = [1, 256], strides = [1, 1]} : vector<4x256xf32> to vector<1x256xf32>
    %74 = vector.broadcast %72 : vector<32x1xf32> to vector<32x256xf32>
    %75 = vector.broadcast %73 : vector<1x256xf32> to vector<32x256xf32>
    %76 = arith.mulf %74, %75 : vector<32x256xf32>
    %77 = arith.addf %71, %76 : vector<32x256xf32>
    %78 = vector.extract_strided_slice %0 {offsets = [0, 3], sizes = [32, 1], strides = [1, 1]} : vector<32x4xf32> to vector<32x1xf32>
    %79 = vector.extract_strided_slice %60 {offsets = [3, 0], sizes = [1, 256], strides = [1, 1]} : vector<4x256xf32> to vector<1x256xf32>
    %80 = vector.broadcast %78 : vector<32x1xf32> to vector<32x256xf32>
    %81 = vector.broadcast %79 : vector<1x256xf32> to vector<32x256xf32>
    %82 = arith.mulf %80, %81 : vector<32x256xf32>
    %83 = arith.addf %77, %82 : vector<32x256xf32>
    %c1_19 = arith.constant 1 : index
    %c0_20 = arith.constant 0 : index
    %c0_21 = arith.constant 0 : index
    %84 = vector.load %arg3[%c1_19, %c0_20, %c0_21] : memref<2x32x1xf32, #tpu.memory_space<vmem>>, vector<1x32x1xf32>
    %85 = vector.shape_cast %84 : vector<1x32x1xf32> to vector<32x1xf32>
    %86 = vector.broadcast %85 : vector<32x1xf32> to vector<32x256xf32>
    %87 = arith.addf %83, %86 : vector<32x256xf32>
    %88 = arith.negf %87 : vector<32x256xf32>
    %89 = math.exp %88 : vector<32x256xf32>
    %cst_22 = arith.constant 1.000000e+00 : f32
    %90 = vector.broadcast %cst_22 : f32 to vector<32x256xf32>
    %91 = arith.addf %90, %89 : vector<32x256xf32>
    %92 = arith.divf %90, %91 : vector<32x256xf32>
    %93 = arith.mulf %87, %92 : vector<32x256xf32>
    %cst_23 = arith.constant dense<0.000000e+00> : vector<4x256xf32>
    %94 = tpu.matmul %1, %93, %cst_23 {dimension_numbers = #tpu.dot_dimension_numbers<[1], [0], [0], [1], [0, 0, 1, 1], [], []>} : vector<4x32xf32>, vector<32x256xf32>, vector<4x256xf32> -> vector<4x256xf32>
    %95 = vector.broadcast %2 : vector<4x1xf32> to vector<4x256xf32>
    %96 = arith.addf %94, %95 : vector<4x256xf32>
    %97 = vector.broadcast %56 : f32 to vector<4x256xf32>
    %98 = arith.mulf %96, %97 : vector<4x256xf32>
    %99 = vector.broadcast %55 : f32 to vector<4x256xf32>
    %100 = arith.mulf %58, %99 : vector<4x256xf32>
    %101 = arith.addf %98, %100 : vector<4x256xf32>
    %c1_24 = arith.constant 1 : index
    %c0_25 = arith.constant 0 : index
    %c0_26 = arith.constant 0 : index
    %102 = vector.load %arg6[%c1_24, %c0_25, %c0_26] : memref<2x4x256xf32, #tpu.memory_space<vmem>>, vector<1x4x256xf32>
    %103 = vector.shape_cast %102 : vector<1x4x256xf32> to vector<4x256xf32>
    %104 = vector.shape_cast %101 : vector<4x256xf32> to vector<1x4x256xf32>
    tpu.vector_store %arg6[%c1_24, %c0_25, %c0_26], %104 {strides = array<i32>} : memref<2x4x256xf32, #tpu.memory_space<vmem>>, vector<1x4x256xf32>,
    return
  }
}

</mosaic_0001>

<llo_original>
// kernel: tpu_custom_call.1
$region0: #{tpu_custom_call.1}
  #allocation0 [shape = 'u32[]', space=smem, size = 0x4, offset = 0x4, fixed_abs, tag = 'smem constant byte address 0x4 - core index']
  #allocation1 [shape = 'u32[144,128]{1,0:T(1,128)}', space=vmem, size = 0x12000, scoped, tag = 'internal scratch']
  %s0 = inlined_call_operand.vmem [shape: f32[6], index: 0, kind: input, shape index: {}]
  %s1 = inlined_call_operand.vmem [shape: f32[2,4,256], index: 1, kind: input, shape index: {}]
  %s2 = inlined_call_operand.vmem [shape: f32[32,4], index: 2, kind: input, shape index: {}]
  %s3 = inlined_call_operand.vmem [shape: f32[2,32,1], index: 3, kind: input, shape index: {}]
  %s4 = inlined_call_operand.vmem [shape: f32[4,32], index: 4, kind: input, shape index: {}]
  %s5 = inlined_call_operand.vmem [shape: f32[4,1], index: 5, kind: input, shape index: {}]
  %s6 = inlined_call_operand.hbm [shape: f32[2,4,256], index: 6, kind: output, shape index: {}]
  %s7 = sld [smem:[#allocation0]]
  $region38: #{tpu_custom_call.1} parent=0
    _
  %s9 = ssub.s32 1, %s7
  %s10 = scalar_select 0, %s9, %s7
  $region1: #{tpu_custom_call.1} parent=0
    #allocation2 [shape = 'u8[512]{0}', space=smem, size = 0x200, scoped, tag = 'input window, operand 0, single buffered']
    #allocation3 [shape = 's32[1]{0}', space=sflag, size = 0x4, scoped, tag = 'scoped memory for tpu_custom_call.1']
    #allocation4 [shape = 's32[1]{0}', space=sflag, size = 0x4, scoped, tag = 'scoped memory for tpu_custom_call.1']
    #allocation5 [shape = 'u8[8192]{0}', space=vmem, size = 0x2000, scoped, tag = 'output window, operand 0, single buffered']
    %11 = vsyncpa [#allocation4], 0
    %12 = vsyncpa [#allocation3], 0
    // Predicated region
    $region2: #{tpu_custom_call.1} parent=1 // pred_check
      _
    $region3: #{tpu_custom_call.1} parent=1 // pred_check_branch
      %14 = sbr.rel (0) target = $region5
    $region4: #{tpu_custom_call.1} parent=1 // pred_region
      %s16 = ssub.s32 16, 16
      %17 = vsyncadd [#allocation4], %s16
      %s19 = sshll.u32 %s0, 4
      %s20 = int_to_ptr.vmem [resolvable:$true] %s19
      %22 = dma.vmem_to_smem %s20, 16, [#allocation2], [#allocation4]
    $region5: #{tpu_custom_call.1} parent=1 // pred_fallthru
      _
    // Predicated region
    $region6: #{tpu_custom_call.1} parent=1 // pred_check
      _
    $region7: #{tpu_custom_call.1} parent=1 // pred_check_branch
      %24 = sbr.rel (0) target = $region9
    $region8: #{tpu_custom_call.1} parent=1 // pred_region
      _
    $region9: #{tpu_custom_call.1} parent=1 // pred_fallthru
      _
    // Predicated region
    $region10: #{tpu_custom_call.1} parent=1 // pred_check
      _
    $region11: #{tpu_custom_call.1} parent=1 // pred_check_branch
      %26 = sbr.rel (0) target = $region13
    $region12: #{tpu_custom_call.1} parent=1 // pred_region
      _
    $region13: #{tpu_custom_call.1} parent=1 // pred_fallthru
      _
    // Predicated region
    $region14: #{tpu_custom_call.1} parent=1 // pred_check
      _
    $region15: #{tpu_custom_call.1} parent=1 // pred_check_branch
      %28 = sbr.rel (0) target = $region17
    $region16: #{tpu_custom_call.1} parent=1 // pred_region
      _
    $region17: #{tpu_custom_call.1} parent=1 // pred_fallthru
      _
    // Predicated region
    $region18: #{tpu_custom_call.1} parent=1 // pred_check
      _
    $region19: #{tpu_custom_call.1} parent=1 // pred_check_branch
      %30 = sbr.rel (0) target = $region21
    $region20: #{tpu_custom_call.1} parent=1 // pred_region
      _
    $region21: #{tpu_custom_call.1} parent=1 // pred_fallthru
      _
    // Predicated region
    $region22: #{tpu_custom_call.1} parent=1 // pred_check
      _
    $region23: #{tpu_custom_call.1} parent=1 // pred_check_branch
      %32 = sbr.rel (0) target = $region25
    $region24: #{tpu_custom_call.1} parent=1 // pred_region
      _
    $region25: #{tpu_custom_call.1} parent=1 // pred_fallthru
      _
    // Predicated region
    $region26: #{tpu_custom_call.1} parent=1 // pred_check
      _
    $region27: #{tpu_custom_call.1} parent=1 // pred_check_branch
      %34 = sbr.rel (0) target = $region29
    $region28: #{tpu_custom_call.1} parent=1 // pred_region
      %35 = dma.done [#allocation4], 16
    $region29: #{tpu_custom_call.1} parent=1 // pred_fallthru
      _
    %36 = sfence
    %v37 = vld [vmem:[%s2] sm:$0xff]
    %v38 = vld [vmem:[%s2 + $0x8] sm:$0xff]
    %v39 = vld [vmem:[%s2 + $0x10] sm:$0xff]
    %v40 = vld [vmem:[%s2 + $0x18] sm:$0xff]
    %v41 = vld [vmem:[%s4] sm:$0xf]
    %v42 = vld [vmem:[%s5] sm:$0xf]
    %s43 = sld [smem:[#allocation2]]
    %s44 = sld [smem:[#allocation2 + $0x1]]
    %s45 = sld [smem:[#allocation2 + $0x2]]
    %v46 = vld [vmem:[%s1] sm:$0xff]
    %v47 = vstv %s43
    %v48 = vmul.f32 %v46, %v47
    %50 = vset.pattern.permute.xlu0 0
    %51 = vperm.xlu0 %50, %v37
    %v52 = vpop.permute.xlu0 %51
    %55 = vset.pattern.permute.xlu0 0
    %56 = vperm.xlu0 %55, %v38
    %v57 = vpop.permute.xlu0 %56
    %60 = vset.pattern.permute.xlu0 0
    %61 = vperm.xlu0 %60, %v39
    %v62 = vpop.permute.xlu0 %61
    %65 = vset.pattern.permute.xlu0 0
    %66 = vperm.xlu0 %65, %v40
    %v67 = vpop.permute.xlu0 %66
    %v70 = vlaneseq
    %v71 = vshrl.u32 %v70, 7
    %v72 = vsub.s32 0, %v71
    %v73 = vrot.slane %v48, %v72
    %v74 = vlaneseq
    %v75 = vshrl.u32 %v74, 7
    %v76 = vsub.s32 4, %v75
    %v77 = vrot.slane %v48, %v76
    %v80 = vlaneseq
    %v81 = vshrl.u32 %v80, 7
    %v82 = vsub.s32 0, %v81
    %v83 = vrot.slane %v73, %v82
    %v84 = vlaneseq
    %v85 = vshrl.u32 %v84, 7
    %v86 = vsub.s32 0, %v85
    %v87 = vrot.slane %v77, %v86
    %v88 = vmul.f32 %v52, %v83
    %v89 = vmul.f32 %v52, %v87
    %v90 = vmul.f32 %v57, %v83
    %v91 = vmul.f32 %v57, %v87
    %v92 = vmul.f32 %v62, %v83
    %v93 = vmul.f32 %v62, %v87
    %v94 = vmul.f32 %v67, %v83
    %v95 = vmul.f32 %v67, %v87
    %96 = vset.pattern.permute.xlu0 1
    %97 = vperm.xlu0 %96, %v37
    %v98 = vpop.permute.xlu0 %97
    %100 = vset.pattern.permute.xlu0 1
    %101 = vperm.xlu0 %100, %v38
    %v102 = vpop.permute.xlu0 %101
    %104 = vset.pattern.permute.xlu0 1
    %105 = vperm.xlu0 %104, %v39
    %v106 = vpop.permute.xlu0 %105
    %108 = vset.pattern.permute.xlu0 1
    %109 = vperm.xlu0 %108, %v40
    %v110 = vpop.permute.xlu0 %109
    %v112 = vlaneseq
    %v113 = vshrl.u32 %v112, 7
    %v114 = vsub.s32 1, %v113
    %v115 = vrot.slane %v48, %v114
    %v116 = vlaneseq
    %v117 = vshrl.u32 %v116, 7
    %v118 = vsub.s32 5, %v117
    %v119 = vrot.slane %v48, %v118
    %v122 = vlaneseq
    %v123 = vshrl.u32 %v122, 7
    %v124 = vsub.s32 1, %v123
    %v125 = vrot.slane %v115, %v124
    %v126 = vlaneseq
    %v127 = vshrl.u32 %v126, 7
    %v128 = vsub.s32 1, %v127
    %v129 = vrot.slane %v119, %v128
    %v130 = vmul.f32 %v98, %v125
    %v131 = vmul.f32 %v98, %v129
    %v132 = vmul.f32 %v102, %v125
    %v133 = vmul.f32 %v102, %v129
    %v134 = vmul.f32 %v106, %v125
    %v135 = vmul.f32 %v106, %v129
    %v136 = vmul.f32 %v110, %v125
    %v137 = vmul.f32 %v110, %v129
    %v138 = vadd.f32 %v88, %v130
    %v139 = vadd.f32 %v89, %v131
    %v140 = vadd.f32 %v90, %v132
    %v141 = vadd.f32 %v91, %v133
    %v142 = vadd.f32 %v92, %v134
    %v143 = vadd.f32 %v93, %v135
    %v144 = vadd.f32 %v94, %v136
    %v145 = vadd.f32 %v95, %v137
    %146 = vset.pattern.permute.xlu0 2
    %147 = vperm.xlu0 %146, %v37
    %v148 = vpop.permute.xlu0 %147
    %150 = vset.pattern.permute.xlu0 2
    %151 = vperm.xlu0 %150, %v38
    %v152 = vpop.permute.xlu0 %151
    %154 = vset.pattern.permute.xlu0 2
    %155 = vperm.xlu0 %154, %v39
    %v156 = vpop.permute.xlu0 %155
    %158 = vset.pattern.permute.xlu0 2
    %159 = vperm.xlu0 %158, %v40
    %v160 = vpop.permute.xlu0 %159
    %v162 = vlaneseq
    %v163 = vshrl.u32 %v162, 7
    %v164 = vsub.s32 2, %v163
    %v165 = vrot.slane %v48, %v164
    %v166 = vlaneseq
    %v167 = vshrl.u32 %v166, 7
    %v168 = vsub.s32 6, %v167
    %v169 = vrot.slane %v48, %v168
    %v172 = vlaneseq
    %v173 = vshrl.u32 %v172, 7
    %v174 = vsub.s32 2, %v173
    %v175 = vrot.slane %v165, %v174
    %v176 = vlaneseq
    %v177 = vshrl.u32 %v176, 7
    %v178 = vsub.s32 2, %v177
    %v179 = vrot.slane %v169, %v178
    %v180 = vmul.f32 %v148, %v175
    %v181 = vmul.f32 %v148, %v179
    %v182 = vmul.f32 %v152, %v175
    %v183 = vmul.f32 %v152, %v179
    %v184 = vmul.f32 %v156, %v175
    %v185 = vmul.f32 %v156, %v179
    %v186 = vmul.f32 %v160, %v175
    %v187 = vmul.f32 %v160, %v179
    %v188 = vadd.f32 %v138, %v180
    %v189 = vadd.f32 %v139, %v181
    %v190 = vadd.f32 %v140, %v182
    %v191 = vadd.f32 %v141, %v183
    %v192 = vadd.f32 %v142, %v184
    %v193 = vadd.f32 %v143, %v185
    %v194 = vadd.f32 %v144, %v186
    %v195 = vadd.f32 %v145, %v187
    %196 = vset.pattern.permute.xlu0 3
    %197 = vperm.xlu0 %196, %v37
    %v198 = vpop.permute.xlu0 %197
    %200 = vset.pattern.permute.xlu0 3
    %201 = vperm.xlu0 %200, %v38
    %v202 = vpop.permute.xlu0 %201
    %204 = vset.pattern.permute.xlu0 3
    %205 = vperm.xlu0 %204, %v39
    %v206 = vpop.permute.xlu0 %205
    %208 = vset.pattern.permute.xlu0 3
    %209 = vperm.xlu0 %208, %v40
    %v210 = vpop.permute.xlu0 %209
    %v212 = vlaneseq
    %v213 = vshrl.u32 %v212, 7
    %v214 = vsub.s32 3, %v213
    %v215 = vrot.slane %v48, %v214
    %v216 = vlaneseq
    %v217 = vshrl.u32 %v216, 7
    %v218 = vsub.s32 7, %v217
    %v219 = vrot.slane %v48, %v218
    %v222 = vlaneseq
    %v223 = vshrl.u32 %v222, 7
    %v224 = vsub.s32 3, %v223
    %v225 = vrot.slane %v215, %v224
    %v226 = vlaneseq
    %v227 = vshrl.u32 %v226, 7
    %v228 = vsub.s32 3, %v227
    %v229 = vrot.slane %v219, %v228
    %v230 = vmul.f32 %v198, %v225
    %v231 = vmul.f32 %v198, %v229
    %v232 = vmul.f32 %v202, %v225
    %v233 = vmul.f32 %v202, %v229
    %v234 = vmul.f32 %v206, %v225
    %v235 = vmul.f32 %v206, %v229
    %v236 = vmul.f32 %v210, %v225
    %v237 = vmul.f32 %v210, %v229
    %v238 = vadd.f32 %v188, %v230
    %v239 = vadd.f32 %v189, %v231
    %v240 = vadd.f32 %v190, %v232
    %v241 = vadd.f32 %v191, %v233
    %v242 = vadd.f32 %v192, %v234
    %v243 = vadd.f32 %v193, %v235
    %v244 = vadd.f32 %v194, %v236
    %v245 = vadd.f32 %v195, %v237
    %v246 = vld [vmem:[%s3] sm:$0xff]
    %v247 = vld [vmem:[%s3 + $0x8] sm:$0xff]
    %v248 = vld [vmem:[%s3 + $0x10] sm:$0xff]
    %v249 = vld [vmem:[%s3 + $0x18] sm:$0xff]
    %251 = vset.pattern.permute.xlu0 0
    %252 = vperm.xlu0 %251, %v246
    %v253 = vpop.permute.xlu0 %252
    %256 = vset.pattern.permute.xlu0 0
    %257 = vperm.xlu0 %256, %v247
    %v258 = vpop.permute.xlu0 %257
    %261 = vset.pattern.permute.xlu0 0
    %262 = vperm.xlu0 %261, %v248
    %v263 = vpop.permute.xlu0 %262
    %266 = vset.pattern.permute.xlu0 0
    %267 = vperm.xlu0 %266, %v249
    %v268 = vpop.permute.xlu0 %267
    %v270 = vadd.f32 %v238, %v253
    %v271 = vadd.f32 %v239, %v253
    %v272 = vadd.f32 %v240, %v258
    %v273 = vadd.f32 %v241, %v258
    %v274 = vadd.f32 %v242, %v263
    %v275 = vadd.f32 %v243, %v263
    %v276 = vadd.f32 %v244, %v268
    %v277 = vadd.f32 %v245, %v268
    %v278 = vxor.u32 %v270, 2147483648
    %v279 = vxor.u32 %v271, 2147483648
    %v280 = vxor.u32 %v272, 2147483648
    %v281 = vxor.u32 %v273, 2147483648
    %v282 = vxor.u32 %v274, 2147483648
    %v283 = vxor.u32 %v275, 2147483648
    %v284 = vxor.u32 %v276, 2147483648
    %v285 = vxor.u32 %v277, 2147483648
    %v286 = vmul.f32 %v278, 1.442695
    %v287 = vpow.pop %v286
    %v288 = vmul.f32 %v279, 1.442695
    %v289 = vpow.pop %v288
    %v290 = vmul.f32 %v280, 1.442695
    %v291 = vpow.pop %v290
    %v292 = vmul.f32 %v281, 1.442695
    %v293 = vpow.pop %v292
    %v294 = vmul.f32 %v282, 1.442695
    %v295 = vpow.pop %v294
    %v296 = vmul.f32 %v283, 1.442695
    %v297 = vpow.pop %v296
    %v298 = vmul.f32 %v284, 1.442695
    %v299 = vpow.pop %v298
    %v300 = vmul.f32 %v285, 1.442695
    %v301 = vpow.pop %v300
    %v302 = vadd.f32 %v287, 1.0
    %v303 = vadd.f32 %v289, 1.0
    %v304 = vadd.f32 %v291, 1.0
    %v305 = vadd.f32 %v293, 1.0
    %v306 = vadd.f32 %v295, 1.0
    %v307 = vadd.f32 %v297, 1.0
    %v308 = vadd.f32 %v299, 1.0
    %v309 = vadd.f32 %v301, 1.0
    %v310 = vrcp.pop %v302
    %v311 = vmul.f32 1.0, %v310
    %v312 = vrcp.pop %v303
    %v313 = vmul.f32 1.0, %v312
    %v314 = vrcp.pop %v304
    %v315 = vmul.f32 1.0, %v314
    %v316 = vrcp.pop %v305
    %v317 = vmul.f32 1.0, %v316
    %v318 = vrcp.pop %v306
    %v319 = vmul.f32 1.0, %v318
    %v320 = vrcp.pop %v307
    %v321 = vmul.f32 1.0, %v320
    %v322 = vrcp.pop %v308
    %v323 = vmul.f32 1.0, %v322
    %v324 = vrcp.pop %v309
    %v325 = vmul.f32 1.0, %v324
    %v326 = vmul.f32 %v270, %v311
    %v327 = vmul.f32 %v271, %v313
    %v328 = vmul.f32 %v272, %v315
    %v329 = vmul.f32 %v273, %v317
    %v330 = vmul.f32 %v274, %v319
    %v331 = vmul.f32 %v275, %v321
    %v332 = vmul.f32 %v276, %v323
    %v333 = vmul.f32 %v277, %v325
    %335 = vset.pattern.permute.xlu0 0
    %336 = vperm.xlu0 %335, %v42
    %v337 = vpop.permute.xlu0 %336
    %vm339 = vcmask 261120
    %v341 = vsel %vm339, %v41, 0
    %343 = vmatprep.subr.mxu0 %v327
    %344 = vmatpush1.msra.mxu0 %v326
    %345 = vmatprep.subr.mxu0 %v329
    %346 = vmatpush1.msra.mxu0 %v328
    %347 = vmatprep.subr.mxu0 %v331
    %348 = vmatpush1.msra.mxu0 %v330
    %349 = vmatprep.subr.mxu0 %v333
    %350 = vmatpush1.msra.mxu0 %v332
    %351 = vmatprep.subr.mxu0 0.0
    %352 = vmatpush1.msra.mxu0 0.0
    %353 = vmatprep.subr.mxu0 0.0
    %354 = vmatpush1.msra.mxu0 0.0
    %355 = vmatprep.subr.mxu0 0.0
    %356 = vmatpush1.msra.mxu0 0.0
    %357 = vmatprep.subr.mxu0 0.0
    %358 = vmatpush1.msra.mxu0 0.0
    %359 = vmatprep.subr.mxu0 0.0
    %360 = vmatpush1.msra.mxu0 0.0
    %361 = vmatprep.subr.mxu0 0.0
    %362 = vmatpush1.msra.mxu0 0.0
    %363 = vmatprep.subr.mxu0 0.0
    %364 = vmatpush1.msra.mxu0 0.0
    %365 = vmatprep.subr.mxu0 0.0
    %366 = vmatpush1.msra.mxu0 0.0
    %367 = vmatprep.subr.mxu0 0.0
    %368 = vmatpush1.msra.mxu0 0.0
    %369 = vmatprep.subr.mxu0 0.0
    %370 = vmatpush1.msra.mxu0 0.0
    %371 = vmatprep.subr.mxu0 0.0
    %372 = vmatpush1.msra.mxu0 0.0
    %373 = vmatprep.subr.mxu0 0.0
    %374 = vmatpush1.msra.mxu0 0.0
    %375 = vmatprep.subr.mxu0 0.0
    %376 = vmatpush1.msra.mxu0 0.0
    %377 = vmatprep.subr.mxu0 0.0
    %378 = vmatpush1.msra.mxu0 0.0
    %379 = vmatprep.subr.mxu0 0.0
    %380 = vmatpush1.msra.mxu0 0.0
    %381 = vmatprep.subr.mxu0 0.0
    %382 = vmatpush1.msra.mxu0 0.0
    %383 = vmatprep.subr.mxu0 0.0
    %384 = vmatpush1.msra.mxu0 0.0
    %385 = vmatprep.subr.mxu0 0.0
    %386 = vmatpush1.msra.mxu0 0.0
    %387 = vmatprep.subr.mxu0 0.0
    %388 = vmatpush1.msra.mxu0 0.0
    %389 = vmatprep.subr.mxu0 0.0
    %390 = vmatpush1.msra.mxu0 0.0
    %391 = vmatprep.subr.mxu0 0.0
    %392 = vmatpush1.msra.mxu0 0.0
    %393 = vmatprep.subr.mxu0 0.0
    %394 = vmatpush1.msra.mxu0 0.0
    %395 = vmatprep.subr.mxu0 0.0
    %396 = vmatpush1.msra.mxu0 0.0
    %397 = vmatprep.subr.mxu0 0.0
    %398 = vmatpush1.msra.mxu0 0.0
    %399 = vmatprep.subr.mxu0 0.0
    %400 = vmatpush1.msra.mxu0 0.0
    %401 = vmatprep.subr.mxu0 0.0
    %402 = vmatpush1.msra.mxu0 0.0
    %403 = vmatprep.subr.mxu0 0.0
    %404 = vmatpush1.msra.mxu0 0.0
    %405 = vmatprep.subr.mxu0 0.0
    %406 = vmatpush1.msra.mxu0 0.0
    %407 = vmatprep.mubr.f32.mxu0 0.0
    %408 = vmatmul.mubr.f32.gmra.mrb[0].mxu0 %v341
    %v409 = vpop.f32.mrb[0].mxu0
    %v410 = vadd.f32 %v337, %v409
    %v411 = vpop.f32.mrb[0].mxu0
    %v412 = vadd.f32 %v337, %v411
    %413 = vdwg.mxu0
    %v414 = vstv %s45
    %v415 = vmul.f32 %v410, %v414
    %v416 = vmul.f32 %v412, %v414
    %v417 = vstv %s44
    %v418 = vmul.f32 %v46, %v417
    %v420 = vcombine.high %v418, %v418
    %v422 = vadd.f32 %v415, %v418
    %v423 = vadd.f32 %v416, %v420
    %v426 = vcombine.low %v422, %v423
    %428 = vst [vmem:[#allocation5] sm:$0xff] %v426
    %s429 = sld [smem:[#allocation2 + $0x3]]
    %s430 = sld [smem:[#allocation2 + $0x4]]
    %s431 = sld [smem:[#allocation2 + $0x5]]
    %s432 = scalar_lea.vmem %s1, 8
    %v433 = vld [vmem:[%s432] sm:$0xff]
    %v434 = vstv %s429
    %v435 = vmul.f32 %v433, %v434
    %v437 = vlaneseq
    %v438 = vshrl.u32 %v437, 7
    %v439 = vsub.s32 0, %v438
    %v440 = vrot.slane %v435, %v439
    %v441 = vlaneseq
    %v442 = vshrl.u32 %v441, 7
    %v443 = vsub.s32 4, %v442
    %v444 = vrot.slane %v435, %v443
    %v447 = vlaneseq
    %v448 = vshrl.u32 %v447, 7
    %v449 = vsub.s32 0, %v448
    %v450 = vrot.slane %v440, %v449
    %v451 = vlaneseq
    %v452 = vshrl.u32 %v451, 7
    %v453 = vsub.s32 0, %v452
    %v454 = vrot.slane %v444, %v453
    %v455 = vmul.f32 %v52, %v450
    %v456 = vmul.f32 %v52, %v454
    %v457 = vmul.f32 %v57, %v450
    %v458 = vmul.f32 %v57, %v454
    %v459 = vmul.f32 %v62, %v450
    %v460 = vmul.f32 %v62, %v454
    %v461 = vmul.f32 %v67, %v450
    %v462 = vmul.f32 %v67, %v454
    %v463 = vlaneseq
    %v464 = vshrl.u32 %v463, 7
    %v465 = vsub.s32 1, %v464
    %v466 = vrot.slane %v435, %v465
    %v467 = vlaneseq
    %v468 = vshrl.u32 %v467, 7
    %v469 = vsub.s32 5, %v468
    %v470 = vrot.slane %v435, %v469
    %v473 = vlaneseq
    %v474 = vshrl.u32 %v473, 7
    %v475 = vsub.s32 1, %v474
    %v476 = vrot.slane %v466, %v475
    %v477 = vlaneseq
    %v478 = vshrl.u32 %v477, 7
    %v479 = vsub.s32 1, %v478
    %v480 = vrot.slane %v470, %v479
    %v481 = vmul.f32 %v98, %v476
    %v482 = vmul.f32 %v98, %v480
    %v483 = vmul.f32 %v102, %v476
    %v484 = vmul.f32 %v102, %v480
    %v485 = vmul.f32 %v106, %v476
    %v486 = vmul.f32 %v106, %v480
    %v487 = vmul.f32 %v110, %v476
    %v488 = vmul.f32 %v110, %v480
    %v489 = vadd.f32 %v455, %v481
    %v490 = vadd.f32 %v456, %v482
    %v491 = vadd.f32 %v457, %v483
    %v492 = vadd.f32 %v458, %v484
    %v493 = vadd.f32 %v459, %v485
    %v494 = vadd.f32 %v460, %v486
    %v495 = vadd.f32 %v461, %v487
    %v496 = vadd.f32 %v462, %v488
    %v497 = vlaneseq
    %v498 = vshrl.u32 %v497, 7
    %v499 = vsub.s32 2, %v498
    %v500 = vrot.slane %v435, %v499
    %v501 = vlaneseq
    %v502 = vshrl.u32 %v501, 7
    %v503 = vsub.s32 6, %v502
    %v504 = vrot.slane %v435, %v503
    %v507 = vlaneseq
    %v508 = vshrl.u32 %v507, 7
    %v509 = vsub.s32 2, %v508
    %v510 = vrot.slane %v500, %v509
    %v511 = vlaneseq
    %v512 = vshrl.u32 %v511, 7
    %v513 = vsub.s32 2, %v512
    %v514 = vrot.slane %v504, %v513
    %v515 = vmul.f32 %v148, %v510
    %v516 = vmul.f32 %v148, %v514
    %v517 = vmul.f32 %v152, %v510
    %v518 = vmul.f32 %v152, %v514
    %v519 = vmul.f32 %v156, %v510
    %v520 = vmul.f32 %v156, %v514
    %v521 = vmul.f32 %v160, %v510
    %v522 = vmul.f32 %v160, %v514
    %v523 = vadd.f32 %v489, %v515
    %v524 = vadd.f32 %v490, %v516
    %v525 = vadd.f32 %v491, %v517
    %v526 = vadd.f32 %v492, %v518
    %v527 = vadd.f32 %v493, %v519
    %v528 = vadd.f32 %v494, %v520
    %v529 = vadd.f32 %v495, %v521
    %v530 = vadd.f32 %v496, %v522
    %v531 = vlaneseq
    %v532 = vshrl.u32 %v531, 7
    %v533 = vsub.s32 3, %v532
    %v534 = vrot.slane %v435, %v533
    %v535 = vlaneseq
    %v536 = vshrl.u32 %v535, 7
    %v537 = vsub.s32 7, %v536
    %v538 = vrot.slane %v435, %v537
    %v541 = vlaneseq
    %v542 = vshrl.u32 %v541, 7
    %v543 = vsub.s32 3, %v542
    %v544 = vrot.slane %v534, %v543
    %v545 = vlaneseq
    %v546 = vshrl.u32 %v545, 7
    %v547 = vsub.s32 3, %v546
    %v548 = vrot.slane %v538, %v547
    %v549 = vmul.f32 %v198, %v544
    %v550 = vmul.f32 %v198, %v548
    %v551 = vmul.f32 %v202, %v544
    %v552 = vmul.f32 %v202, %v548
    %v553 = vmul.f32 %v206, %v544
    %v554 = vmul.f32 %v206, %v548
    %v555 = vmul.f32 %v210, %v544
    %v556 = vmul.f32 %v210, %v548
    %v557 = vadd.f32 %v523, %v549
    %v558 = vadd.f32 %v524, %v550
    %v559 = vadd.f32 %v525, %v551
    %v560 = vadd.f32 %v526, %v552
    %v561 = vadd.f32 %v527, %v553
    %v562 = vadd.f32 %v528, %v554
    %v563 = vadd.f32 %v529, %v555
    %v564 = vadd.f32 %v530, %v556
    %s565 = scalar_lea.vmem %s3, 32
    %v566 = vld [vmem:[%s565] sm:$0xff]
    %v567 = vld [vmem:[%s565 + $0x8] sm:$0xff]
    %v568 = vld [vmem:[%s565 + $0x10] sm:$0xff]
    %v569 = vld [vmem:[%s565 + $0x18] sm:$0xff]
    %571 = vset.pattern.permute.xlu0 0
    %572 = vperm.xlu0 %571, %v566
    %v573 = vpop.permute.xlu0 %572
    %576 = vset.pattern.permute.xlu0 0
    %577 = vperm.xlu0 %576, %v567
    %v578 = vpop.permute.xlu0 %577
    %581 = vset.pattern.permute.xlu0 0
    %582 = vperm.xlu0 %581, %v568
    %v583 = vpop.permute.xlu0 %582
    %586 = vset.pattern.permute.xlu0 0
    %587 = vperm.xlu0 %586, %v569
    %v588 = vpop.permute.xlu0 %587
    %v590 = vadd.f32 %v557, %v573
    %v591 = vadd.f32 %v558, %v573
    %v592 = vadd.f32 %v559, %v578
    %v593 = vadd.f32 %v560, %v578
    %v594 = vadd.f32 %v561, %v583
    %v595 = vadd.f32 %v562, %v583
    %v596 = vadd.f32 %v563, %v588
    %v597 = vadd.f32 %v564, %v588
    %v598 = vxor.u32 %v590, 2147483648
    %v599 = vxor.u32 %v591, 2147483648
    %v600 = vxor.u32 %v592, 2147483648
    %v601 = vxor.u32 %v593, 2147483648
    %v602 = vxor.u32 %v594, 2147483648
    %v603 = vxor.u32 %v595, 2147483648
    %v604 = vxor.u32 %v596, 2147483648
    %v605 = vxor.u32 %v597, 2147483648
    %v606 = vmul.f32 %v598, 1.442695
    %v607 = vpow.pop %v606
    %v608 = vmul.f32 %v599, 1.442695
    %v609 = vpow.pop %v608
    %v610 = vmul.f32 %v600, 1.442695
    %v611 = vpow.pop %v610
    %v612 = vmul.f32 %v601, 1.442695
    %v613 = vpow.pop %v612
    %v614 = vmul.f32 %v602, 1.442695
    %v615 = vpow.pop %v614
    %v616 = vmul.f32 %v603, 1.442695
    %v617 = vpow.pop %v616
    %v618 = vmul.f32 %v604, 1.442695
    %v619 = vpow.pop %v618
    %v620 = vmul.f32 %v605, 1.442695
    %v621 = vpow.pop %v620
    %v622 = vadd.f32 %v607, 1.0
    %v623 = vadd.f32 %v609, 1.0
    %v624 = vadd.f32 %v611, 1.0
    %v625 = vadd.f32 %v613, 1.0
    %v626 = vadd.f32 %v615, 1.0
    %v627 = vadd.f32 %v617, 1.0
    %v628 = vadd.f32 %v619, 1.0
    %v629 = vadd.f32 %v621, 1.0
    %v630 = vrcp.pop %v622
    %v631 = vmul.f32 1.0, %v630
    %v632 = vrcp.pop %v623
    %v633 = vmul.f32 1.0, %v632
    %v634 = vrcp.pop %v624
    %v635 = vmul.f32 1.0, %v634
    %v636 = vrcp.pop %v625
    %v637 = vmul.f32 1.0, %v636
    %v638 = vrcp.pop %v626
    %v639 = vmul.f32 1.0, %v638
    %v640 = vrcp.pop %v627
    %v641 = vmul.f32 1.0, %v640
    %v642 = vrcp.pop %v628
    %v643 = vmul.f32 1.0, %v642
    %v644 = vrcp.pop %v629
    %v645 = vmul.f32 1.0, %v644
    %v646 = vmul.f32 %v590, %v631
    %v647 = vmul.f32 %v591, %v633
    %v648 = vmul.f32 %v592, %v635
    %v649 = vmul.f32 %v593, %v637
    %v650 = vmul.f32 %v594, %v639
    %v651 = vmul.f32 %v595, %v641
    %v652 = vmul.f32 %v596, %v643
    %v653 = vmul.f32 %v597, %v645
    %654 = vmatprep.subr.mxu0 %v647
    %655 = vmatpush1.msra.mxu0 %v646
    %656 = vmatprep.subr.mxu0 %v649
    %657 = vmatpush1.msra.mxu0 %v648
    %658 = vmatprep.subr.mxu0 %v651
    %659 = vmatpush1.msra.mxu0 %v650
    %660 = vmatprep.subr.mxu0 %v653
    %661 = vmatpush1.msra.mxu0 %v652
    %662 = vmatprep.subr.mxu0 0.0
    %663 = vmatpush1.msra.mxu0 0.0
    %664 = vmatprep.subr.mxu0 0.0
    %665 = vmatpush1.msra.mxu0 0.0
    %666 = vmatprep.subr.mxu0 0.0
    %667 = vmatpush1.msra.mxu0 0.0
    %668 = vmatprep.subr.mxu0 0.0
    %669 = vmatpush1.msra.mxu0 0.0
    %670 = vmatprep.subr.mxu0 0.0
    %671 = vmatpush1.msra.mxu0 0.0
    %672 = vmatprep.subr.mxu0 0.0
    %673 = vmatpush1.msra.mxu0 0.0
    %674 = vmatprep.subr.mxu0 0.0
    %675 = vmatpush1.msra.mxu0 0.0
    %676 = vmatprep.subr.mxu0 0.0
    %677 = vmatpush1.msra.mxu0 0.0
    %678 = vmatprep.subr.mxu0 0.0
    %679 = vmatpush1.msra.mxu0 0.0
    %680 = vmatprep.subr.mxu0 0.0
    %681 = vmatpush1.msra.mxu0 0.0
    %682 = vmatprep.subr.mxu0 0.0
    %683 = vmatpush1.msra.mxu0 0.0
    %684 = vmatprep.subr.mxu0 0.0
    %685 = vmatpush1.msra.mxu0 0.0
    %686 = vmatprep.subr.mxu0 0.0
    %687 = vmatpush1.msra.mxu0 0.0
    %688 = vmatprep.subr.mxu0 0.0
    %689 = vmatpush1.msra.mxu0 0.0
    %690 = vmatprep.subr.mxu0 0.0
    %691 = vmatpush1.msra.mxu0 0.0
    %692 = vmatprep.subr.mxu0 0.0
    %693 = vmatpush1.msra.mxu0 0.0
    %694 = vmatprep.subr.mxu0 0.0
    %695 = vmatpush1.msra.mxu0 0.0
    %696 = vmatprep.subr.mxu0 0.0
    %697 = vmatpush1.msra.mxu0 0.0
    %698 = vmatprep.subr.mxu0 0.0
    %699 = vmatpush1.msra.mxu0 0.0
    %700 = vmatprep.subr.mxu0 0.0
    %701 = vmatpush1.msra.mxu0 0.0
    %702 = vmatprep.subr.mxu0 0.0
    %703 = vmatpush1.msra.mxu0 0.0
    %704 = vmatprep.subr.mxu0 0.0
    %705 = vmatpush1.msra.mxu0 0.0
    %706 = vmatprep.subr.mxu0 0.0
    %707 = vmatpush1.msra.mxu0 0.0
    %708 = vmatprep.subr.mxu0 0.0
    %709 = vmatpush1.msra.mxu0 0.0
    %710 = vmatprep.subr.mxu0 0.0
    %711 = vmatpush1.msra.mxu0 0.0
    %712 = vmatprep.subr.mxu0 0.0
    %713 = vmatpush1.msra.mxu0 0.0
    %714 = vmatprep.subr.mxu0 0.0
    %715 = vmatpush1.msra.mxu0 0.0
    %716 = vmatprep.subr.mxu0 0.0
    %717 = vmatpush1.msra.mxu0 0.0
    %718 = vmatprep.mubr.f32.mxu0 0.0
    %719 = vmatmul.mubr.f32.gmra.mrb[0].mxu0 %v341
    %v720 = vpop.f32.mrb[0].mxu0
    %v721 = vadd.f32 %v337, %v720
    %v722 = vpop.f32.mrb[0].mxu0
    %v723 = vadd.f32 %v337, %v722
    %724 = vdwg.mxu0
    %v725 = vstv %s431
    %v726 = vmul.f32 %v721, %v725
    %v727 = vmul.f32 %v723, %v725
    %v728 = vstv %s430
    %v729 = vmul.f32 %v433, %v728
    %v731 = vcombine.high %v729, %v729
    %v733 = vadd.f32 %v726, %v729
    %v734 = vadd.f32 %v727, %v731
    %v737 = vcombine.low %v733, %v734
    %s739 = scalar_lea.vmem [#allocation5], 8
    %740 = vst [vmem:[%s739] sm:$0xff] %v737
    // Predicated region
    $region30: #{tpu_custom_call.1} parent=1 // pred_check
      _
    $region31: #{tpu_custom_call.1} parent=1 // pred_check_branch
      %742 = sbr.rel (0) target = $region33
    $region32: #{tpu_custom_call.1} parent=1 // pred_region
      %s744 = ssub.s32 256, 256
      %745 = vsyncadd [#allocation3], %s744
      %s746 = sshll.u32 [#allocation5], 4
      %s747 = int_to_ptr.vmem [resolvable:$true] %s746
      %752 = dma.vmem_to_hbm [thread:$0]  %s747, 256, %s6, [#allocation3], 128, 128, 8
    $region33: #{tpu_custom_call.1} parent=1 // pred_fallthru
      _
    // Predicated region
    $region34: #{tpu_custom_call.1} parent=1 // pred_check
      _
    $region35: #{tpu_custom_call.1} parent=1 // pred_check_branch
      %754 = sbr.rel (0) target = $region37
    $region36: #{tpu_custom_call.1} parent=1 // pred_region
      %755 = dma.done [#allocation3], 256
    $region37: #{tpu_custom_call.1} parent=1 // pred_fallthru
      _
    %756 = vsyncpa [#allocation3], 1
    %757 = vsyncpa [#allocation4], 1

</llo_original>
